<compile_context>
chip_gen: v6e
topology: v6e:2x2x1
jax: 0.10.0
libtpu: 0.0.40
codegen_flags: <defaults>
</compile_context>

<pallas_src>
import jax
import jax.numpy as jnp
from jax import lax
from jax.experimental import pallas as pl
from jax.experimental.pallas import tpu as pltpu

# ----------------------------- configuration -------------------------------
B = 2            # batch
N = 8            # sequence length
C = 32           # n_embeddings
H = 2            # n_heads
D = 64           # head_dim
INNER = H * D    # inner_dim = 128
SCALE = C ** (-0.5)   # intentional: PyTorch module scales by n_embeddings**-0.5


# ------------------------------- kernel ------------------------------------
def attention_kernel(x_ref, mask_ref, wqkv_ref, wout_ref, bout_ref, o_ref):
    # x_ref:    (B*N, C)      all batch rows, flattened (lane-dense 2D slab)
    # mask_ref: (B, N)        float, 1.0 => masked key
    # wqkv_ref: (C, 3*INNER)
    # wout_ref: (INNER, C)
    # bout_ref: (1, C)
    # o_ref:    (B*N, C)
    x = x_ref[...]                                   # (B*N, C)
    wout = wout_ref[...]                             # (INNER, C)
    bout = bout_ref[...]                             # (1, C)

    # Single QKV projection for the whole batch (one MXU call).
    qkv = jnp.dot(x, wqkv_ref[...],
                  preferred_element_type=jnp.float32)           # (B*N, 3*INNER)

    # Additive mask bias, computed once (hoisted out of the B/H loops):
    # masked_fill(mask == 1, -inf)  ==  dots + (-inf at masked key positions)
    bias_all = jnp.where(mask_ref[...] == 1.0,
                         jnp.float32(-jnp.inf), jnp.float32(0.0))  # (B, N)

    for b in range(B):                               # unrolled (B = 2)
        qkv_b = qkv[b * N:(b + 1) * N, :]            # (N, 3*INNER), static slice
        bias_b = bias_all[b:b + 1, :]                # (1, N), broadcast over queries

        acc = jnp.zeros((N, C), jnp.float32)         # f32 output accumulator
        for h in range(H):                           # unrolled (H = 2)
            q = qkv_b[:, h * D:(h + 1) * D]                          # (N, D)
            k = qkv_b[:, INNER + h * D:INNER + (h + 1) * D]          # (N, D)
            v = qkv_b[:, 2 * INNER + h * D:2 * INNER + (h + 1) * D]  # (N, D)

            # q @ k^T without materializing k.T (contract last dims directly).
            dots = lax.dot_general(
                q, k, (((1,), (1,)), ((), ())),
                preferred_element_type=jnp.float32) * SCALE          # (N, N)
            dots = dots + bias_b                                     # additive mask

            # softmax over keys; divide -> approx reciprocal (EUP) * multiply
            dots = dots - jnp.max(dots, axis=-1, keepdims=True)
            p = jnp.exp(dots)
            inv = pl.reciprocal(jnp.sum(p, axis=-1, keepdims=True), approx=True)
            attn = p * inv                                           # (N, N)

            ov = jnp.dot(attn, v, preferred_element_type=jnp.float32)  # (N, D)
            # Per-head output projection: no lane-axis head concat needed.
            acc = acc + jnp.dot(ov, wout[h * D:(h + 1) * D, :],
                                preferred_element_type=jnp.float32)    # (N, C)

        # bias added once per batch row block
        o_ref[b * N:(b + 1) * N, :] = (acc + bout).astype(o_ref.dtype)


# ------------------------------ wrapper -------------------------------------
@jax.jit
def attention_pallas(x, mask, w_qkv, w_out, b_out):
    x2d = x.reshape(B * N, C)
    out2d = pl.pallas_call(
        attention_kernel,
        out_shape=jax.ShapeDtypeStruct((B * N, C), x.dtype),
        grid_spec=pltpu.PrefetchScalarGridSpec(
            num_scalar_prefetch=0,
            grid=(1,),                      # single step: whole problem fits VMEM
            in_specs=[
                pl.BlockSpec((B * N, C), lambda i: (0, 0)),        # x (flattened)
                pl.BlockSpec((B, N), lambda i: (0, 0)),            # mask
                pl.BlockSpec((C, 3 * INNER), lambda i: (0, 0)),    # w_qkv
                pl.BlockSpec((INNER, C), lambda i: (0, 0)),        # w_out
                pl.BlockSpec((1, C), lambda i: (0, 0)),            # b_out
            ],
            out_specs=pl.BlockSpec((B * N, C), lambda i: (0, 0)),
        ),
        # grid of 1: nothing to megacore-shard -> no dimension_semantics.
    )(x2d, mask, w_qkv, w_out, b_out)
    return out2d.reshape(B, N, C)


# ----------------------------- reference ------------------------------------
def attention_reference(x, mask, w_qkv, w_out, b_out):
    qkv = x @ w_qkv                                   # (B, N, 3*INNER)
    q, k, v = jnp.split(qkv, 3, axis=-1)

    def to_heads(t):
        return t.reshape(B, N, H, D).transpose(0, 2, 1, 3)   # (B, H, N, D)

    q, k, v = map(to_heads, (q, k, v))
    dots = jnp.einsum('bhid,bhjd->bhij', q, k) * SCALE
    dots = jnp.where(mask[:, None, None, :] == 1.0, -jnp.inf, dots)
    attn = jax.nn.softmax(dots, axis=-1)
    out = jnp.einsum('bhij,bhjd->bhid', attn, v)
    out = out.transpose(0, 2, 1, 3).reshape(B, N, INNER)
    return out @ w_out + b_out


# -------------------------------- main ---------------------------------------
if __name__ == "__main__":
    key = jax.random.PRNGKey(0)
    k1, k2, k3, k4 = jax.random.split(key, 4)

    x = jax.random.normal(k1, (B, N, C), dtype=jnp.float32)
    # mask: (B, N) with 1.0 marking masked key positions
    # (torch: rearrange(mask, 'l j -> l () () j'); masked_fill_(mask == 1, -inf))
    mask = jnp.zeros((B, N), dtype=jnp.float32)
    mask = mask.at[0, N - 1].set(1.0)

    # deterministic synthetic parameters (torch Linear weight is (out, in);
    # we store the transposed (in, out) layout for y = x @ W)
    w_qkv = 0.05 * jax.random.normal(k2, (C, 3 * INNER), dtype=jnp.float32)
    w_out = 0.05 * jax.random.normal(k3, (INNER, C), dtype=jnp.float32)
    b_out = 0.05 * jax.random.normal(k4, (1, C), dtype=jnp.float32)

    out = attention_pallas(x, mask, w_qkv, w_out, b_out)
    jax.block_until_ready(out)

    ref = attention_reference(x, mask, w_qkv, w_out, b_out)
    assert out.shape == (B, N, C), out.shape
    # tolerance relaxed slightly (1e-3) for the EUP approx-reciprocal softmax
    assert jnp.allclose(out, ref, atol=1e-3, rtol=1e-3), \
        float(jnp.max(jnp.abs(out - ref)))

    print("KERNEL_OK")
</pallas_src>

<mosaic_0001>
module attributes {stable_mosaic.version = 11 : i64} {
  func.func @attention_kernel(%arg0: i32, %arg1: memref<16x32xf32, #tpu.memory_space<vmem>>, %arg2: memref<2x8xf32, #tpu.memory_space<vmem>>, %arg3: memref<32x384xf32, #tpu.memory_space<vmem>>, %arg4: memref<128x32xf32, #tpu.memory_space<vmem>>, %arg5: memref<1x32xf32, #tpu.memory_space<vmem>>, %arg6: memref<16x32xf32, #tpu.memory_space<vmem>>) attributes {dimension_semantics = [#tpu.dimension_semantics<arbitrary>], iteration_bounds = array<i64: 1>, scalar_prefetch = 0 : i64, scratch_operands = 0 : i64, tpu.core_type = #tpu.core_type<tc>, window_params = [{pipeline_mode = #tpu.pipeline_mode<synchronous>, transform_indices = @transform_0, window_bounds = array<i64: 16, 32>}, {pipeline_mode = #tpu.pipeline_mode<synchronous>, transform_indices = @transform_1, window_bounds = array<i64: 2, 8>}, {pipeline_mode = #tpu.pipeline_mode<synchronous>, transform_indices = @transform_2, window_bounds = array<i64: 32, 384>}, {pipeline_mode = #tpu.pipeline_mode<synchronous>, transform_indices = @transform_3, window_bounds = array<i64: 128, 32>}, {pipeline_mode = #tpu.pipeline_mode<synchronous>, transform_indices = @transform_4, window_bounds = array<i64: 1, 32>}, {pipeline_mode = #tpu.pipeline_mode<synchronous>, transform_indices = @transform_5, window_bounds = array<i64: 16, 32>}]} {
    %c0 = arith.constant 0 : index
    %c0_0 = arith.constant 0 : index
    %0 = vector.load %arg1[%c0, %c0_0] : memref<16x32xf32, #tpu.memory_space<vmem>>, vector<16x32xf32>
    %c0_1 = arith.constant 0 : index
    %c0_2 = arith.constant 0 : index
    %1 = vector.load %arg4[%c0_1, %c0_2] : memref<128x32xf32, #tpu.memory_space<vmem>>, vector<128x32xf32>
    %c0_3 = arith.constant 0 : index
    %c0_4 = arith.constant 0 : index
    %2 = vector.load %arg5[%c0_3, %c0_4] : memref<1x32xf32, #tpu.memory_space<vmem>>, vector<1x32xf32>
    %c0_5 = arith.constant 0 : index
    %c0_6 = arith.constant 0 : index
    %3 = vector.load %arg3[%c0_5, %c0_6] : memref<32x384xf32, #tpu.memory_space<vmem>>, vector<32x384xf32>
    %cst = arith.constant dense<0.000000e+00> : vector<16x384xf32>
    %4 = tpu.matmul %0, %3, %cst {dimension_numbers = #tpu.dot_dimension_numbers<[1], [0], [0], [1], [0, 0, 1, 1], [], []>} : vector<16x32xf32>, vector<32x384xf32>, vector<16x384xf32> -> vector<16x384xf32>
    %c0_7 = arith.constant 0 : index
    %c0_8 = arith.constant 0 : index
    %5 = vector.load %arg2[%c0_7, %c0_8] : memref<2x8xf32, #tpu.memory_space<vmem>>, vector<2x8xf32>
    %cst_9 = arith.constant 1.000000e+00 : f32
    %6 = vector.broadcast %cst_9 : f32 to vector<2x8xf32>
    %7 = arith.cmpf oeq, %5, %6 : vector<2x8xf32>
    %cst_10 = arith.constant 0xFF800000 : f32
    %cst_11 = arith.constant 0.000000e+00 : f32
    %8 = vector.broadcast %cst_10 : f32 to vector<2x8xf32>
    %9 = vector.broadcast %cst_11 : f32 to vector<2x8xf32>
    %10 = arith.select %7, %8, %9 : vector<2x8xi1>, vector<2x8xf32>
    %11 = vector.extract_strided_slice %4 {offsets = [0, 0], sizes = [8, 384], strides = [1, 1]} : vector<16x384xf32> to vector<8x384xf32>
    %12 = vector.extract_strided_slice %10 {offsets = [0, 0], sizes = [1, 8], strides = [1, 1]} : vector<2x8xf32> to vector<1x8xf32>
    %cst_12 = arith.constant 0.000000e+00 : f32
    %13 = vector.broadcast %cst_12 : f32 to vector<8x32xf32>
    %14 = vector.extract_strided_slice %11 {offsets = [0, 0], sizes = [8, 64], strides = [1, 1]} : vector<8x384xf32> to vector<8x64xf32>
    %15 = vector.extract_strided_slice %11 {offsets = [0, 128], sizes = [8, 64], strides = [1, 1]} : vector<8x384xf32> to vector<8x64xf32>
    %16 = vector.extract_strided_slice %11 {offsets = [0, 256], sizes = [8, 64], strides = [1, 1]} : vector<8x384xf32> to vector<8x64xf32>
    %cst_13 = arith.constant dense<0.000000e+00> : vector<8x8xf32>
    %17 = tpu.matmul %14, %15, %cst_13 {dimension_numbers = #tpu.dot_dimension_numbers<[1], [1], [0], [0], [0, 0, 1, 0], [], []>} : vector<8x64xf32>, vector<8x64xf32>, vector<8x8xf32> -> vector<8x8xf32>
    %cst_14 = arith.constant 0.176776692 : f32
    %18 = vector.broadcast %cst_14 : f32 to vector<8x8xf32>
    %19 = arith.mulf %17, %18 : vector<8x8xf32>
    %20 = vector.broadcast %12 : vector<1x8xf32> to vector<8x8xf32>
    %21 = arith.addf %19, %20 : vector<8x8xf32>
    %cst_15 = arith.constant dense<0xFF800000> : vector<8xf32>
    %22 = vector.multi_reduction <maximumf>, %21, %cst_15 [1] : vector<8x8xf32> to vector<8xf32>
    %23 = vector.shape_cast %22 : vector<8xf32> to vector<8x1xf32>
    %24 = vector.broadcast %23 : vector<8x1xf32> to vector<8x8xf32>
    %25 = arith.subf %21, %24 : vector<8x8xf32>
    %26 = math.exp %25 : vector<8x8xf32>
    %cst_16 = arith.constant dense<0.000000e+00> : vector<8xf32>
    %27 = vector.multi_reduction <add>, %26, %cst_16 [1] : vector<8x8xf32> to vector<8xf32>
    %28 = vector.shape_cast %27 : vector<8xf32> to vector<8x1xf32>
    %29 = tpu.reciprocal %28 {approx = true} : vector<8x1xf32> -> vector<8x1xf32>
    %30 = vector.broadcast %29 : vector<8x1xf32> to vector<8x8xf32>
    %31 = arith.mulf %26, %30 : vector<8x8xf32>
    %cst_17 = arith.constant dense<0.000000e+00> : vector<8x64xf32>
    %32 = tpu.matmul %31, %16, %cst_17 {dimension_numbers = #tpu.dot_dimension_numbers<[1], [0], [0], [1], [0, 0, 1, 1], [], []>} : vector<8x8xf32>, vector<8x64xf32>, vector<8x64xf32> -> vector<8x64xf32>
    %33 = vector.extract_strided_slice %1 {offsets = [0, 0], sizes = [64, 32], strides = [1, 1]} : vector<128x32xf32> to vector<64x32xf32>
    %cst_18 = arith.constant dense<0.000000e+00> : vector<8x32xf32>
    %34 = tpu.matmul %32, %33, %cst_18 {dimension_numbers = #tpu.dot_dimension_numbers<[1], [0], [0], [1], [0, 0, 1, 1], [], []>} : vector<8x64xf32>, vector<64x32xf32>, vector<8x32xf32> -> vector<8x32xf32>
    %35 = arith.addf %13, %34 : vector<8x32xf32>
    %36 = vector.extract_strided_slice %11 {offsets = [0, 64], sizes = [8, 64], strides = [1, 1]} : vector<8x384xf32> to vector<8x64xf32>
    %37 = vector.extract_strided_slice %11 {offsets = [0, 192], sizes = [8, 64], strides = [1, 1]} : vector<8x384xf32> to vector<8x64xf32>
    %38 = vector.extract_strided_slice %11 {offsets = [0, 320], sizes = [8, 64], strides = [1, 1]} : vector<8x384xf32> to vector<8x64xf32>
    %cst_19 = arith.constant dense<0.000000e+00> : vector<8x8xf32>
    %39 = tpu.matmul %36, %37, %cst_19 {dimension_numbers = #tpu.dot_dimension_numbers<[1], [1], [0], [0], [0, 0, 1, 0], [], []>} : vector<8x64xf32>, vector<8x64xf32>, vector<8x8xf32> -> vector<8x8xf32>
    %cst_20 = arith.constant 0.176776692 : f32
    %40 = vector.broadcast %cst_20 : f32 to vector<8x8xf32>
    %41 = arith.mulf %39, %40 : vector<8x8xf32>
    %42 = vector.broadcast %12 : vector<1x8xf32> to vector<8x8xf32>
    %43 = arith.addf %41, %42 : vector<8x8xf32>
    %cst_21 = arith.constant dense<0xFF800000> : vector<8xf32>
    %44 = vector.multi_reduction <maximumf>, %43, %cst_21 [1] : vector<8x8xf32> to vector<8xf32>
    %45 = vector.shape_cast %44 : vector<8xf32> to vector<8x1xf32>
    %46 = vector.broadcast %45 : vector<8x1xf32> to vector<8x8xf32>
    %47 = arith.subf %43, %46 : vector<8x8xf32>
    %48 = math.exp %47 : vector<8x8xf32>
    %cst_22 = arith.constant dense<0.000000e+00> : vector<8xf32>
    %49 = vector.multi_reduction <add>, %48, %cst_22 [1] : vector<8x8xf32> to vector<8xf32>
    %50 = vector.shape_cast %49 : vector<8xf32> to vector<8x1xf32>
    %51 = tpu.reciprocal %50 {approx = true} : vector<8x1xf32> -> vector<8x1xf32>
    %52 = vector.broadcast %51 : vector<8x1xf32> to vector<8x8xf32>
    %53 = arith.mulf %48, %52 : vector<8x8xf32>
    %cst_23 = arith.constant dense<0.000000e+00> : vector<8x64xf32>
    %54 = tpu.matmul %53, %38, %cst_23 {dimension_numbers = #tpu.dot_dimension_numbers<[1], [0], [0], [1], [0, 0, 1, 1], [], []>} : vector<8x8xf32>, vector<8x64xf32>, vector<8x64xf32> -> vector<8x64xf32>
    %55 = vector.extract_strided_slice %1 {offsets = [64, 0], sizes = [64, 32], strides = [1, 1]} : vector<128x32xf32> to vector<64x32xf32>
    %cst_24 = arith.constant dense<0.000000e+00> : vector<8x32xf32>
    %56 = tpu.matmul %54, %55, %cst_24 {dimension_numbers = #tpu.dot_dimension_numbers<[1], [0], [0], [1], [0, 0, 1, 1], [], []>} : vector<8x64xf32>, vector<64x32xf32>, vector<8x32xf32> -> vector<8x32xf32>
    %57 = arith.addf %35, %56 : vector<8x32xf32>
    %58 = vector.broadcast %2 : vector<1x32xf32> to vector<8x32xf32>
    %59 = arith.addf %57, %58 : vector<8x32xf32>
    %c0_25 = arith.constant 0 : index
    %c0_26 = arith.constant 0 : index
    %60 = vector.load %arg6[%c0_25, %c0_26] : memref<16x32xf32, #tpu.memory_space<vmem>>, vector<8x32xf32>
    tpu.vector_store %arg6[%c0_25, %c0_26], %59 {strides = array<i32>} : memref<16x32xf32, #tpu.memory_space<vmem>>, vector<8x32xf32>,
    %61 = vector.extract_strided_slice %4 {offsets = [8, 0], sizes = [8, 384], strides = [1, 1]} : vector<16x384xf32> to vector<8x384xf32>
    %62 = vector.extract_strided_slice %10 {offsets = [1, 0], sizes = [1, 8], strides = [1, 1]} : vector<2x8xf32> to vector<1x8xf32>
    %cst_27 = arith.constant 0.000000e+00 : f32
    %63 = vector.broadcast %cst_27 : f32 to vector<8x32xf32>
    %64 = vector.extract_strided_slice %61 {offsets = [0, 0], sizes = [8, 64], strides = [1, 1]} : vector<8x384xf32> to vector<8x64xf32>
    %65 = vector.extract_strided_slice %61 {offsets = [0, 128], sizes = [8, 64], strides = [1, 1]} : vector<8x384xf32> to vector<8x64xf32>
    %66 = vector.extract_strided_slice %61 {offsets = [0, 256], sizes = [8, 64], strides = [1, 1]} : vector<8x384xf32> to vector<8x64xf32>
    %cst_28 = arith.constant dense<0.000000e+00> : vector<8x8xf32>
    %67 = tpu.matmul %64, %65, %cst_28 {dimension_numbers = #tpu.dot_dimension_numbers<[1], [1], [0], [0], [0, 0, 1, 0], [], []>} : vector<8x64xf32>, vector<8x64xf32>, vector<8x8xf32> -> vector<8x8xf32>
    %cst_29 = arith.constant 0.176776692 : f32
    %68 = vector.broadcast %cst_29 : f32 to vector<8x8xf32>
    %69 = arith.mulf %67, %68 : vector<8x8xf32>
    %70 = vector.broadcast %62 : vector<1x8xf32> to vector<8x8xf32>
    %71 = arith.addf %69, %70 : vector<8x8xf32>
    %cst_30 = arith.constant dense<0xFF800000> : vector<8xf32>
    %72 = vector.multi_reduction <maximumf>, %71, %cst_30 [1] : vector<8x8xf32> to vector<8xf32>
    %73 = vector.shape_cast %72 : vector<8xf32> to vector<8x1xf32>
    %74 = vector.broadcast %73 : vector<8x1xf32> to vector<8x8xf32>
    %75 = arith.subf %71, %74 : vector<8x8xf32>
    %76 = math.exp %75 : vector<8x8xf32>
    %cst_31 = arith.constant dense<0.000000e+00> : vector<8xf32>
    %77 = vector.multi_reduction <add>, %76, %cst_31 [1] : vector<8x8xf32> to vector<8xf32>
    %78 = vector.shape_cast %77 : vector<8xf32> to vector<8x1xf32>
    %79 = tpu.reciprocal %78 {approx = true} : vector<8x1xf32> -> vector<8x1xf32>
    %80 = vector.broadcast %79 : vector<8x1xf32> to vector<8x8xf32>
    %81 = arith.mulf %76, %80 : vector<8x8xf32>
    %cst_32 = arith.constant dense<0.000000e+00> : vector<8x64xf32>
    %82 = tpu.matmul %81, %66, %cst_32 {dimension_numbers = #tpu.dot_dimension_numbers<[1], [0], [0], [1], [0, 0, 1, 1], [], []>} : vector<8x8xf32>, vector<8x64xf32>, vector<8x64xf32> -> vector<8x64xf32>
    %83 = vector.extract_strided_slice %1 {offsets = [0, 0], sizes = [64, 32], strides = [1, 1]} : vector<128x32xf32> to vector<64x32xf32>
    %cst_33 = arith.constant dense<0.000000e+00> : vector<8x32xf32>
    %84 = tpu.matmul %82, %83, %cst_33 {dimension_numbers = #tpu.dot_dimension_numbers<[1], [0], [0], [1], [0, 0, 1, 1], [], []>} : vector<8x64xf32>, vector<64x32xf32>, vector<8x32xf32> -> vector<8x32xf32>
    %85 = arith.addf %63, %84 : vector<8x32xf32>
    %86 = vector.extract_strided_slice %61 {offsets = [0, 64], sizes = [8, 64], strides = [1, 1]} : vector<8x384xf32> to vector<8x64xf32>
    %87 = vector.extract_strided_slice %61 {offsets = [0, 192], sizes = [8, 64], strides = [1, 1]} : vector<8x384xf32> to vector<8x64xf32>
    %88 = vector.extract_strided_slice %61 {offsets = [0, 320], sizes = [8, 64], strides = [1, 1]} : vector<8x384xf32> to vector<8x64xf32>
    %cst_34 = arith.constant dense<0.000000e+00> : vector<8x8xf32>
    %89 = tpu.matmul %86, %87, %cst_34 {dimension_numbers = #tpu.dot_dimension_numbers<[1], [1], [0], [0], [0, 0, 1, 0], [], []>} : vector<8x64xf32>, vector<8x64xf32>, vector<8x8xf32> -> vector<8x8xf32>
    %cst_35 = arith.constant 0.176776692 : f32
    %90 = vector.broadcast %cst_35 : f32 to vector<8x8xf32>
    %91 = arith.mulf %89, %90 : vector<8x8xf32>
    %92 = vector.broadcast %62 : vector<1x8xf32> to vector<8x8xf32>
    %93 = arith.addf %91, %92 : vector<8x8xf32>
    %cst_36 = arith.constant dense<0xFF800000> : vector<8xf32>
    %94 = vector.multi_reduction <maximumf>, %93, %cst_36 [1] : vector<8x8xf32> to vector<8xf32>
    %95 = vector.shape_cast %94 : vector<8xf32> to vector<8x1xf32>
    %96 = vector.broadcast %95 : vector<8x1xf32> to vector<8x8xf32>
    %97 = arith.subf %93, %96 : vector<8x8xf32>
    %98 = math.exp %97 : vector<8x8xf32>
    %cst_37 = arith.constant dense<0.000000e+00> : vector<8xf32>
    %99 = vector.multi_reduction <add>, %98, %cst_37 [1] : vector<8x8xf32> to vector<8xf32>
    %100 = vector.shape_cast %99 : vector<8xf32> to vector<8x1xf32>
    %101 = tpu.reciprocal %100 {approx = true} : vector<8x1xf32> -> vector<8x1xf32>
    %102 = vector.broadcast %101 : vector<8x1xf32> to vector<8x8xf32>
    %103 = arith.mulf %98, %102 : vector<8x8xf32>
    %cst_38 = arith.constant dense<0.000000e+00> : vector<8x64xf32>
    %104 = tpu.matmul %103, %88, %cst_38 {dimension_numbers = #tpu.dot_dimension_numbers<[1], [0], [0], [1], [0, 0, 1, 1], [], []>} : vector<8x8xf32>, vector<8x64xf32>, vector<8x64xf32> -> vector<8x64xf32>
    %105 = vector.extract_strided_slice %1 {offsets = [64, 0], sizes = [64, 32], strides = [1, 1]} : vector<128x32xf32> to vector<64x32xf32>
    %cst_39 = arith.constant dense<0.000000e+00> : vector<8x32xf32>
    %106 = tpu.matmul %104, %105, %cst_39 {dimension_numbers = #tpu.dot_dimension_numbers<[1], [0], [0], [1], [0, 0, 1, 1], [], []>} : vector<8x64xf32>, vector<64x32xf32>, vector<8x32xf32> -> vector<8x32xf32>
    %107 = arith.addf %85, %106 : vector<8x32xf32>
    %108 = vector.broadcast %2 : vector<1x32xf32> to vector<8x32xf32>
    %109 = arith.addf %107, %108 : vector<8x32xf32>
    %c8 = arith.constant 8 : index
    %c0_40 = arith.constant 0 : index
    %110 = vector.load %arg6[%c8, %c0_40] : memref<16x32xf32, #tpu.memory_space<vmem>>, vector<8x32xf32>
    tpu.vector_store %arg6[%c8, %c0_40], %109 {strides = array<i32>} : memref<16x32xf32, #tpu.memory_space<vmem>>, vector<8x32xf32>,
    return
  }
  func.func @transform_0(%arg0: i32) -> (i32, i32) {
    %c0_i32 = arith.constant 0 : i32
    %c0_i32_0 = arith.constant 0 : i32
    %c0_i32_1 = arith.constant 0 : i32
    return %c0_i32, %c0_i32_0 : i32, i32
  }
  func.func @transform_1(%arg0: i32) -> (i32, i32) {
    %c0_i32 = arith.constant 0 : i32
    %c0_i32_0 = arith.constant 0 : i32
    %c0_i32_1 = arith.constant 0 : i32
    return %c0_i32, %c0_i32_0 : i32, i32
  }
  func.func @transform_2(%arg0: i32) -> (i32, i32) {
    %c0_i32 = arith.constant 0 : i32
    %c0_i32_0 = arith.constant 0 : i32
    %c0_i32_1 = arith.constant 0 : i32
    return %c0_i32, %c0_i32_0 : i32, i32
  }
  func.func @transform_3(%arg0: i32) -> (i32, i32) {
    %c0_i32 = arith.constant 0 : i32
    %c0_i32_0 = arith.constant 0 : i32
    %c0_i32_1 = arith.constant 0 : i32
    return %c0_i32, %c0_i32_0 : i32, i32
  }
  func.func @transform_4(%arg0: i32) -> (i32, i32) {
    %c0_i32 = arith.constant 0 : i32
    %c0_i32_0 = arith.constant 0 : i32
    %c0_i32_1 = arith.constant 0 : i32
    return %c0_i32, %c0_i32_0 : i32, i32
  }
  func.func @transform_5(%arg0: i32) -> (i32, i32) {
    %c0_i32 = arith.constant 0 : i32
    %c0_i32_0 = arith.constant 0 : i32
    %c0_i32_1 = arith.constant 0 : i32
    return %c0_i32, %c0_i32_0 : i32, i32
  }
}

</mosaic_0001>

<llo_original>
// kernel: attention_pallas.1
$region0: #{attention_pallas.1}
  #allocation0 [shape = 'u32[]', space=smem, size = 0x4, offset = 0x4, fixed_abs, tag = 'smem constant byte address 0x4 - core index']
  #allocation1 [shape = 'u32[144,128]{1,0:T(1,128)}', space=vmem, size = 0x12000, scoped, tag = 'internal scratch']
  %s0 = inlined_call_operand.vmem [shape: f32[16,32], index: 0, kind: input, shape index: {}]
  %s1 = inlined_call_operand.vmem [shape: f32[2,8], index: 1, kind: input, shape index: {}]
  %s2 = inlined_call_operand.vmem [shape: f32[32,384], index: 2, kind: input, shape index: {}]
  %s3 = inlined_call_operand.vmem [shape: f32[128,32], index: 3, kind: input, shape index: {}]
  %s4 = inlined_call_operand.vmem [shape: f32[1,32], index: 4, kind: input, shape index: {}]
  %s5 = inlined_call_operand.hbm [shape: f32[16,32], index: 5, kind: output, shape index: {}]
  %s6 = sld [smem:[#allocation0]]
  $region30: #{attention_pallas.1} parent=0
    _
  %s8 = ssub.s32 1, %s6
  %s9 = scalar_select 0, %s8, %s6
  $region1: #{attention_pallas.1} parent=0
    #allocation2 [shape = 'u8[8192]{0}', space=vmem, size = 0x2000, scoped, tag = 'output window, operand 0, single buffered']
    #allocation3 [shape = 's32[1]{0}', space=sflag, size = 0x4, scoped, tag = 'scoped memory for attention_pallas.1']
    %10 = vsyncpa [#allocation3], 0
    // Predicated region
    $region2: #{attention_pallas.1} parent=1 // pred_check
      _
    $region3: #{attention_pallas.1} parent=1 // pred_check_branch
      %12 = sbr.rel (0) target = $region5
    $region4: #{attention_pallas.1} parent=1 // pred_region
      _
    $region5: #{attention_pallas.1} parent=1 // pred_fallthru
      _
    // Predicated region
    $region6: #{attention_pallas.1} parent=1 // pred_check
      _
    $region7: #{attention_pallas.1} parent=1 // pred_check_branch
      %14 = sbr.rel (0) target = $region9
    $region8: #{attention_pallas.1} parent=1 // pred_region
      _
    $region9: #{attention_pallas.1} parent=1 // pred_fallthru
      _
    // Predicated region
    $region10: #{attention_pallas.1} parent=1 // pred_check
      _
    $region11: #{attention_pallas.1} parent=1 // pred_check_branch
      %16 = sbr.rel (0) target = $region13
    $region12: #{attention_pallas.1} parent=1 // pred_region
      _
    $region13: #{attention_pallas.1} parent=1 // pred_fallthru
      _
    // Predicated region
    $region14: #{attention_pallas.1} parent=1 // pred_check
      _
    $region15: #{attention_pallas.1} parent=1 // pred_check_branch
      %18 = sbr.rel (0) target = $region17
    $region16: #{attention_pallas.1} parent=1 // pred_region
      _
    $region17: #{attention_pallas.1} parent=1 // pred_fallthru
      _
    // Predicated region
    $region18: #{attention_pallas.1} parent=1 // pred_check
      _
    $region19: #{attention_pallas.1} parent=1 // pred_check_branch
      %20 = sbr.rel (0) target = $region21
    $region20: #{attention_pallas.1} parent=1 // pred_region
      _
    $region21: #{attention_pallas.1} parent=1 // pred_fallthru
      _
    %v21 = vld [vmem:[%s0] sm:$0xff]
    %v22 = vld [vmem:[%s0 + $0x8] sm:$0xff]
    %v23 = vld [vmem:[%s3] sm:$0xff]
    %v24 = vld [vmem:[%s3 + $0x8] sm:$0xff]
    %v25 = vld [vmem:[%s3 + $0x10] sm:$0xff]
    %v26 = vld [vmem:[%s3 + $0x18] sm:$0xff]
    %v27 = vld [vmem:[%s3 + $0x20] sm:$0xff]
    %v28 = vld [vmem:[%s3 + $0x28] sm:$0xff]
    %v29 = vld [vmem:[%s3 + $0x30] sm:$0xff]
    %v30 = vld [vmem:[%s3 + $0x38] sm:$0xff]
    %v31 = vld [vmem:[%s3 + $0x40] sm:$0xff]
    %v32 = vld [vmem:[%s3 + $0x48] sm:$0xff]
    %v33 = vld [vmem:[%s3 + $0x50] sm:$0xff]
    %v34 = vld [vmem:[%s3 + $0x58] sm:$0xff]
    %v35 = vld [vmem:[%s3 + $0x60] sm:$0xff]
    %v36 = vld [vmem:[%s3 + $0x68] sm:$0xff]
    %v37 = vld [vmem:[%s3 + $0x70] sm:$0xff]
    %v38 = vld [vmem:[%s3 + $0x78] sm:$0xff]
    %v39 = vld [vmem:[%s4] sm:$0x1]
    %v40 = vld [vmem:[%s2] sm:$0xff]
    %v41 = vld [vmem:[%s2 + $0x8] sm:$0xff]
    %v42 = vld [vmem:[%s2 + $0x10] sm:$0xff]
    %v43 = vld [vmem:[%s2 + $0x18] sm:$0xff]
    %v44 = vld [vmem:[%s2 + $0x20] sm:$0xff]
    %v45 = vld [vmem:[%s2 + $0x28] sm:$0xff]
    %v46 = vld [vmem:[%s2 + $0x30] sm:$0xff]
    %v47 = vld [vmem:[%s2 + $0x38] sm:$0xff]
    %v48 = vld [vmem:[%s2 + $0x40] sm:$0xff]
    %v49 = vld [vmem:[%s2 + $0x48] sm:$0xff]
    %v50 = vld [vmem:[%s2 + $0x50] sm:$0xff]
    %v51 = vld [vmem:[%s2 + $0x58] sm:$0xff]
    %vm52 = vcmask 261120
    %v54 = vsel %vm52, %v21, 0
    %v57 = vsel %vm52, %v22, 0
    %59 = vmatprep.subr.mxu0 0.0
    %60 = vmatpush1.msra.mxu0 0.0
    %61 = vmatprep.subr.mxu0 0.0
    %62 = vmatpush1.msra.mxu0 0.0
    %63 = vmatprep.subr.mxu0 0.0
    %64 = vmatpush1.msra.mxu0 0.0
    %65 = vmatprep.subr.mxu0 0.0
    %66 = vmatpush1.msra.mxu0 0.0
    %67 = vmatprep.subr.mxu0 0.0
    %68 = vmatpush1.msra.mxu0 0.0
    %69 = vmatprep.subr.mxu0 0.0
    %70 = vmatpush1.msra.mxu0 0.0
    %71 = vmatprep.subr.mxu0 0.0
    %72 = vmatpush1.msra.mxu0 0.0
    %73 = vmatprep.subr.mxu0 0.0
    %74 = vmatpush1.msra.mxu0 0.0
    %75 = vmatprep.subr.mxu0 0.0
    %76 = vmatpush1.msra.mxu0 0.0
    %77 = vmatprep.subr.mxu0 0.0
    %78 = vmatpush1.msra.mxu0 0.0
    %79 = vmatprep.subr.mxu0 0.0
    %80 = vmatpush1.msra.mxu0 0.0
    %81 = vmatprep.subr.mxu0 0.0
    %82 = vmatpush1.msra.mxu0 0.0
    %83 = vmatprep.subr.mxu0 %v50
    %84 = vmatpush1.msra.mxu0 %v49
    %85 = vmatprep.subr.mxu0 %v47
    %86 = vmatpush1.msra.mxu0 %v46
    %87 = vmatprep.subr.mxu0 %v44
    %88 = vmatpush1.msra.mxu0 %v43
    %89 = vmatprep.subr.mxu0 %v41
    %90 = vmatpush1.msra.mxu0 %v40
    %91 = vmatprep.subr.mxu0 0.0
    %92 = vmatpush2.msra.mxu0 0.0
    %93 = vmatprep.subr.mxu0 0.0
    %94 = vmatpush2.msra.mxu0 0.0
    %95 = vmatprep.subr.mxu0 0.0
    %96 = vmatpush2.msra.mxu0 0.0
    %97 = vmatprep.subr.mxu0 0.0
    %98 = vmatpush2.msra.mxu0 0.0
    %99 = vmatprep.subr.mxu0 0.0
    %100 = vmatpush2.msra.mxu0 0.0
    %101 = vmatprep.subr.mxu0 0.0
    %102 = vmatpush2.msra.mxu0 0.0
    %103 = vmatprep.subr.mxu0 0.0
    %104 = vmatpush2.msra.mxu0 0.0
    %105 = vmatprep.subr.mxu0 0.0
    %106 = vmatpush2.msra.mxu0 0.0
    %107 = vmatprep.subr.mxu0 0.0
    %108 = vmatpush2.msra.mxu0 0.0
    %109 = vmatprep.subr.mxu0 0.0
    %110 = vmatpush2.msra.mxu0 0.0
    %111 = vmatprep.subr.mxu0 0.0
    %112 = vmatpush2.msra.mxu0 0.0
    %113 = vmatprep.subr.mxu0 0.0
    %114 = vmatpush2.msra.mxu0 0.0
    %115 = vmatprep.subr.mxu0 0.0
    %116 = vmatpush2.msra.mxu0 0.0
    %117 = vmatprep.subr.mxu0 0.0
    %118 = vmatpush2.msra.mxu0 0.0
    %119 = vmatprep.subr.mxu0 0.0
    %120 = vmatpush2.msra.mxu0 0.0
    %121 = vmatprep.subr.mxu0 0.0
    %122 = vmatpush2.msra.mxu0 0.0
    %123 = vmatprep.mubr.f32.mxu0 0.0
    %124 = vmatmul.mubr.f32.gmra.mxu0 %v54
    %v125 = vpop.f32.mrf.mxu0
    %v126 = vadd.f32 0.0, %v125
    %v127 = vpop.f32.mrf.mxu0
    %v128 = vadd.f32 0.0, %v127
    %129 = vmatprep.mubr.f32.mxu0 0.0
    %130 = vmatmul.mubr.f32.gmra.mxu0 %v57
    %v131 = vpop.f32.mrf.mxu0
    %v132 = vadd.f32 0.0, %v131
    %v133 = vpop.f32.mrf.mxu0
    %v134 = vadd.f32 0.0, %v133
    %135 = vdwg.mxu0
    %136 = vmatprep.subr.mxu0 0.0
    %137 = vmatpush1.msra.mxu0 0.0
    %138 = vmatprep.subr.mxu0 0.0
    %139 = vmatpush1.msra.mxu0 0.0
    %140 = vmatprep.subr.mxu0 0.0
    %141 = vmatpush1.msra.mxu0 0.0
    %142 = vmatprep.subr.mxu0 0.0
    %143 = vmatpush1.msra.mxu0 0.0
    %144 = vmatprep.subr.mxu0 0.0
    %145 = vmatpush1.msra.mxu0 0.0
    %146 = vmatprep.subr.mxu0 0.0
    %147 = vmatpush1.msra.mxu0 0.0
    %148 = vmatprep.subr.mxu0 0.0
    %149 = vmatpush1.msra.mxu0 0.0
    %150 = vmatprep.subr.mxu0 0.0
    %151 = vmatpush1.msra.mxu0 0.0
    %152 = vmatprep.subr.mxu0 0.0
    %153 = vmatpush1.msra.mxu0 0.0
    %154 = vmatprep.subr.mxu0 0.0
    %155 = vmatpush1.msra.mxu0 0.0
    %156 = vmatprep.subr.mxu0 0.0
    %157 = vmatpush1.msra.mxu0 0.0
    %158 = vmatprep.subr.mxu0 0.0
    %159 = vmatpush1.msra.mxu0 0.0
    %160 = vmatprep.subr.mxu0 0.0
    %161 = vmatpush1.msra.mxu0 %v51
    %162 = vmatprep.subr.mxu0 0.0
    %163 = vmatpush1.msra.mxu0 %v48
    %164 = vmatprep.subr.mxu0 0.0
    %165 = vmatpush1.msra.mxu0 %v45
    %166 = vmatprep.subr.mxu0 0.0
    %167 = vmatpush1.msra.mxu0 %v42
    %168 = vmatprep.subr.mxu0 0.0
    %169 = vmatpush2.msra.mxu0 0.0
    %170 = vmatprep.subr.mxu0 0.0
    %171 = vmatpush2.msra.mxu0 0.0
    %172 = vmatprep.subr.mxu0 0.0
    %173 = vmatpush2.msra.mxu0 0.0
    %174 = vmatprep.subr.mxu0 0.0
    %175 = vmatpush2.msra.mxu0 0.0
    %176 = vmatprep.subr.mxu0 0.0
    %177 = vmatpush2.msra.mxu0 0.0
    %178 = vmatprep.subr.mxu0 0.0
    %179 = vmatpush2.msra.mxu0 0.0
    %180 = vmatprep.subr.mxu0 0.0
    %181 = vmatpush2.msra.mxu0 0.0
    %182 = vmatprep.subr.mxu0 0.0
    %183 = vmatpush2.msra.mxu0 0.0
    %184 = vmatprep.subr.mxu0 0.0
    %185 = vmatpush2.msra.mxu0 0.0
    %186 = vmatprep.subr.mxu0 0.0
    %187 = vmatpush2.msra.mxu0 0.0
    %188 = vmatprep.subr.mxu0 0.0
    %189 = vmatpush2.msra.mxu0 0.0
    %190 = vmatprep.subr.mxu0 0.0
    %191 = vmatpush2.msra.mxu0 0.0
    %192 = vmatprep.subr.mxu0 0.0
    %193 = vmatpush2.msra.mxu0 0.0
    %194 = vmatprep.subr.mxu0 0.0
    %195 = vmatpush2.msra.mxu0 0.0
    %196 = vmatprep.subr.mxu0 0.0
    %197 = vmatpush2.msra.mxu0 0.0
    %198 = vmatprep.subr.mxu0 0.0
    %199 = vmatpush2.msra.mxu0 0.0
    %200 = vmatprep.mubr.f32.mxu0 0.0
    %201 = vmatmul.mubr.f32.gmra.mxu0 %v54
    %v202 = vpop.f32.mrf.mxu0
    %v203 = vadd.f32 0.0, %v202
    %v204 = vpop.f32.mrf.mxu0
    %205 = vmatprep.mubr.f32.mxu0 0.0
    %206 = vmatmul.mubr.f32.gmra.mxu0 %v57
    %v207 = vpop.f32.mrf.mxu0
    %v208 = vadd.f32 0.0, %v207
    %v209 = vpop.f32.mrf.mxu0
    %210 = vdwg.mxu0
    %v211 = vld [vmem:[%s1] sm:$0x3]
    %vm212 = vcmp.eq.f32.partialorder %v211, 1.0
    %v213 = vsel %vm212, -inf, 0.0
    %vm214 = vcmask 523264
    %v216 = vsel %vm214, %v126, 0
    %v219 = vsel %vm214, %v128, 0
    %221 = vmatprep.subr.mxu0 0.0
    %222 = vmatpush1.xpose.msra.mxu0 0.0
    %223 = vmatprep.subr.mxu0 0.0
    %224 = vmatpush1.xpose.msra.mxu0 0.0
    %225 = vmatprep.subr.mxu0 0.0
    %226 = vmatpush1.xpose.msra.mxu0 0.0
    %227 = vmatprep.subr.mxu0 0.0
    %228 = vmatpush1.xpose.msra.mxu0 0.0
    %229 = vmatprep.subr.mxu0 0.0
    %230 = vmatpush1.xpose.msra.mxu0 0.0
    %231 = vmatprep.subr.mxu0 0.0
    %232 = vmatpush1.xpose.msra.mxu0 0.0
    %233 = vmatprep.subr.mxu0 0.0
    %234 = vmatpush1.xpose.msra.mxu0 0.0
    %235 = vmatprep.subr.mxu0 0.0
    %236 = vmatpush1.xpose.msra.mxu0 0.0
    %237 = vmatprep.subr.mxu0 0.0
    %238 = vmatpush1.xpose.msra.mxu0 0.0
    %239 = vmatprep.subr.mxu0 0.0
    %240 = vmatpush1.xpose.msra.mxu0 0.0
    %241 = vmatprep.subr.mxu0 0.0
    %242 = vmatpush1.xpose.msra.mxu0 0.0
    %243 = vmatprep.subr.mxu0 0.0
    %244 = vmatpush1.xpose.msra.mxu0 0.0
    %245 = vmatprep.subr.mxu0 0.0
    %246 = vmatpush1.xpose.msra.mxu0 0.0
    %247 = vmatprep.subr.mxu0 0.0
    %248 = vmatpush1.xpose.msra.mxu0 0.0
    %249 = vmatprep.subr.mxu0 0.0
    %250 = vmatpush1.xpose.msra.mxu0 0.0
    %251 = vmatprep.subr.mxu0 0.0
    %252 = vmatpush1.xpose.msra.mxu0 %v219
    %253 = vmatprep.subr.mxu0 0.0
    %254 = vmatpush2.xpose.msra.mxu0 0.0
    %255 = vmatprep.subr.mxu0 0.0
    %256 = vmatpush2.xpose.msra.mxu0 0.0
    %257 = vmatprep.subr.mxu0 0.0
    %258 = vmatpush2.xpose.msra.mxu0 0.0
    %259 = vmatprep.subr.mxu0 0.0
    %260 = vmatpush2.xpose.msra.mxu0 0.0
    %261 = vmatprep.subr.mxu0 0.0
    %262 = vmatpush2.xpose.msra.mxu0 0.0
    %263 = vmatprep.subr.mxu0 0.0
    %264 = vmatpush2.xpose.msra.mxu0 0.0
    %265 = vmatprep.subr.mxu0 0.0
    %266 = vmatpush2.xpose.msra.mxu0 0.0
    %267 = vmatprep.subr.mxu0 0.0
    %268 = vmatpush2.xpose.msra.mxu0 0.0
    %269 = vmatprep.subr.mxu0 0.0
    %270 = vmatpush2.xpose.msra.mxu0 0.0
    %271 = vmatprep.subr.mxu0 0.0
    %272 = vmatpush2.xpose.msra.mxu0 0.0
    %273 = vmatprep.subr.mxu0 0.0
    %274 = vmatpush2.xpose.msra.mxu0 0.0
    %275 = vmatprep.subr.mxu0 0.0
    %276 = vmatpush2.xpose.msra.mxu0 0.0
    %277 = vmatprep.subr.mxu0 0.0
    %278 = vmatpush2.xpose.msra.mxu0 0.0
    %279 = vmatprep.subr.mxu0 0.0
    %280 = vmatpush2.xpose.msra.mxu0 0.0
    %281 = vmatprep.subr.mxu0 0.0
    %282 = vmatpush2.xpose.msra.mxu0 0.0
    %283 = vmatprep.subr.mxu0 0.0
    %284 = vmatpush2.xpose.msra.mxu0 0.0
    %285 = vmatprep.mubr.f32.mxu0 0.0
    %286 = vmatmul.mubr.f32.gmra.mxu0 %v216
    %v287 = vpop.f32.mrf.mxu0
    %v288 = vadd.f32 0.0, %v287
    %v289 = vpop.f32.mrf.mxu0
    %290 = vdwg.mxu0
    %v291 = vmul.f32 %v288, 0.17677669
    %v292 = vlaneseq
    %v293 = vshrl.u32 %v292, 7
    %v294 = vsub.s32 0, %v293
    %v295 = vrot.slane %v213, %v294
    %v296 = vadd.f32 %v291, %v295
    %vm297 = vcmask 64512
    %v298 = vsel %vm297, %v296, -inf
    %299 = vmax.xlane.f32.xlu0 %v298
    %v300 = vpop.xlane.xlu0 %299
    %v301 = vsub.f32 %v296, %v300
    %v302 = vmul.f32 %v301, 1.442695
    %v303 = vpow.pop %v302
    %v304 = vsel %vm297, %v303, 0.0
    %305 = vadd.xlane.f32.xlu0 %v304
    %v306 = vpop.xlane.xlu0 %305
    %v307 = vrcp.pop %v306
    %v308 = vmul.f32 %v303, %v307
    %v310 = vsel %vm297, %v308, 0
    %312 = vmatprep.subr.mxu0 0.0
    %313 = vmatpush1.msra.mxu0 0.0
    %314 = vmatprep.subr.mxu0 0.0
    %315 = vmatpush1.msra.mxu0 0.0
    %316 = vmatprep.subr.mxu0 0.0
    %317 = vmatpush1.msra.mxu0 0.0
    %318 = vmatprep.subr.mxu0 0.0
    %319 = vmatpush1.msra.mxu0 0.0
    %320 = vmatprep.subr.mxu0 0.0
    %321 = vmatpush1.msra.mxu0 0.0
    %322 = vmatprep.subr.mxu0 0.0
    %323 = vmatpush1.msra.mxu0 0.0
    %324 = vmatprep.subr.mxu0 0.0
    %325 = vmatpush1.msra.mxu0 0.0
    %326 = vmatprep.subr.mxu0 0.0
    %327 = vmatpush1.msra.mxu0 0.0
    %328 = vmatprep.subr.mxu0 0.0
    %329 = vmatpush1.msra.mxu0 0.0
    %330 = vmatprep.subr.mxu0 0.0
    %331 = vmatpush1.msra.mxu0 0.0
    %332 = vmatprep.subr.mxu0 0.0
    %333 = vmatpush1.msra.mxu0 0.0
    %334 = vmatprep.subr.mxu0 0.0
    %335 = vmatpush1.msra.mxu0 0.0
    %336 = vmatprep.subr.mxu0 0.0
    %337 = vmatpush1.msra.mxu0 0.0
    %338 = vmatprep.subr.mxu0 0.0
    %339 = vmatpush1.msra.mxu0 0.0
    %340 = vmatprep.subr.mxu0 0.0
    %341 = vmatpush1.msra.mxu0 0.0
    %342 = vmatprep.subr.mxu0 0.0
    %343 = vmatpush1.msra.mxu0 %v203
    %344 = vmatprep.subr.mxu0 0.0
    %345 = vmatpush2.msra.mxu0 0.0
    %346 = vmatprep.subr.mxu0 0.0
    %347 = vmatpush2.msra.mxu0 0.0
    %348 = vmatprep.subr.mxu0 0.0
    %349 = vmatpush2.msra.mxu0 0.0
    %350 = vmatprep.subr.mxu0 0.0
    %351 = vmatpush2.msra.mxu0 0.0
    %352 = vmatprep.subr.mxu0 0.0
    %353 = vmatpush2.msra.mxu0 0.0
    %354 = vmatprep.subr.mxu0 0.0
    %355 = vmatpush2.msra.mxu0 0.0
    %356 = vmatprep.subr.mxu0 0.0
    %357 = vmatpush2.msra.mxu0 0.0
    %358 = vmatprep.subr.mxu0 0.0
    %359 = vmatpush2.msra.mxu0 0.0
    %360 = vmatprep.subr.mxu0 0.0
    %361 = vmatpush2.msra.mxu0 0.0
    %362 = vmatprep.subr.mxu0 0.0
    %363 = vmatpush2.msra.mxu0 0.0
    %364 = vmatprep.subr.mxu0 0.0
    %365 = vmatpush2.msra.mxu0 0.0
    %366 = vmatprep.subr.mxu0 0.0
    %367 = vmatpush2.msra.mxu0 0.0
    %368 = vmatprep.subr.mxu0 0.0
    %369 = vmatpush2.msra.mxu0 0.0
    %370 = vmatprep.subr.mxu0 0.0
    %371 = vmatpush2.msra.mxu0 0.0
    %372 = vmatprep.subr.mxu0 0.0
    %373 = vmatpush2.msra.mxu0 0.0
    %374 = vmatprep.subr.mxu0 0.0
    %375 = vmatpush2.msra.mxu0 0.0
    %376 = vmatprep.mubr.f32.mxu0 0.0
    %377 = vmatmul.mubr.f32.gmra.mxu0 %v310
    %v378 = vpop.f32.mrf.mxu0
    %v379 = vadd.f32 0.0, %v378
    %v380 = vpop.f32.mrf.mxu0
    %381 = vdwg.mxu0
    %382 = vrot.lane.b32.xlu0 %v126, 64
    %v383 = vpop.permute.xlu0 %382
    %384 = vrot.lane.b32.xlu0 %v128, 64
    %v385 = vpop.permute.xlu0 %384
    %v386 = vsel %vm214, %v383, 0
    %v388 = vsel %vm214, %v385, 0
    %390 = vmatprep.subr.mxu0 0.0
    %391 = vmatpush1.xpose.msra.mxu0 0.0
    %392 = vmatprep.subr.mxu0 0.0
    %393 = vmatpush1.xpose.msra.mxu0 0.0
    %394 = vmatprep.subr.mxu0 0.0
    %395 = vmatpush1.xpose.msra.mxu0 0.0
    %396 = vmatprep.subr.mxu0 0.0
    %397 = vmatpush1.xpose.msra.mxu0 0.0
    %398 = vmatprep.subr.mxu0 0.0
    %399 = vmatpush1.xpose.msra.mxu0 0.0
    %400 = vmatprep.subr.mxu0 0.0
    %401 = vmatpush1.xpose.msra.mxu0 0.0
    %402 = vmatprep.subr.mxu0 0.0
    %403 = vmatpush1.xpose.msra.mxu0 0.0
    %404 = vmatprep.subr.mxu0 0.0
    %405 = vmatpush1.xpose.msra.mxu0 0.0
    %406 = vmatprep.subr.mxu0 0.0
    %407 = vmatpush1.xpose.msra.mxu0 0.0
    %408 = vmatprep.subr.mxu0 0.0
    %409 = vmatpush1.xpose.msra.mxu0 0.0
    %410 = vmatprep.subr.mxu0 0.0
    %411 = vmatpush1.xpose.msra.mxu0 0.0
    %412 = vmatprep.subr.mxu0 0.0
    %413 = vmatpush1.xpose.msra.mxu0 0.0
    %414 = vmatprep.subr.mxu0 0.0
    %415 = vmatpush1.xpose.msra.mxu0 0.0
    %416 = vmatprep.subr.mxu0 0.0
    %417 = vmatpush1.xpose.msra.mxu0 0.0
    %418 = vmatprep.subr.mxu0 0.0
    %419 = vmatpush1.xpose.msra.mxu0 0.0
    %420 = vmatprep.subr.mxu0 0.0
    %421 = vmatpush1.xpose.msra.mxu0 %v388
    %422 = vmatprep.subr.mxu0 0.0
    %423 = vmatpush2.xpose.msra.mxu0 0.0
    %424 = vmatprep.subr.mxu0 0.0
    %425 = vmatpush2.xpose.msra.mxu0 0.0
    %426 = vmatprep.subr.mxu0 0.0
    %427 = vmatpush2.xpose.msra.mxu0 0.0
    %428 = vmatprep.subr.mxu0 0.0
    %429 = vmatpush2.xpose.msra.mxu0 0.0
    %430 = vmatprep.subr.mxu0 0.0
    %431 = vmatpush2.xpose.msra.mxu0 0.0
    %432 = vmatprep.subr.mxu0 0.0
    %433 = vmatpush2.xpose.msra.mxu0 0.0
    %434 = vmatprep.subr.mxu0 0.0
    %435 = vmatpush2.xpose.msra.mxu0 0.0
    %436 = vmatprep.subr.mxu0 0.0
    %437 = vmatpush2.xpose.msra.mxu0 0.0
    %438 = vmatprep.subr.mxu0 0.0
    %439 = vmatpush2.xpose.msra.mxu0 0.0
    %440 = vmatprep.subr.mxu0 0.0
    %441 = vmatpush2.xpose.msra.mxu0 0.0
    %442 = vmatprep.subr.mxu0 0.0
    %443 = vmatpush2.xpose.msra.mxu0 0.0
    %444 = vmatprep.subr.mxu0 0.0
    %445 = vmatpush2.xpose.msra.mxu0 0.0
    %446 = vmatprep.subr.mxu0 0.0
    %447 = vmatpush2.xpose.msra.mxu0 0.0
    %448 = vmatprep.subr.mxu0 0.0
    %449 = vmatpush2.xpose.msra.mxu0 0.0
    %450 = vmatprep.subr.mxu0 0.0
    %451 = vmatpush2.xpose.msra.mxu0 0.0
    %452 = vmatprep.subr.mxu0 0.0
    %453 = vmatpush2.xpose.msra.mxu0 0.0
    %454 = vmatprep.mubr.f32.mxu0 0.0
    %455 = vmatmul.mubr.f32.gmra.mxu0 %v386
    %v456 = vpop.f32.mrf.mxu0
    %v457 = vadd.f32 0.0, %v456
    %v458 = vpop.f32.mrf.mxu0
    %459 = vdwg.mxu0
    %v460 = vmul.f32 %v457, 0.17677669
    %v461 = vadd.f32 %v460, %v295
    %v462 = vsel %vm297, %v461, -inf
    %463 = vmax.xlane.f32.xlu0 %v462
    %v464 = vpop.xlane.xlu0 %463
    %v465 = vsub.f32 %v461, %v464
    %v466 = vmul.f32 %v465, 1.442695
    %v467 = vpow.pop %v466
    %v468 = vsel %vm297, %v467, 0.0
    %469 = vadd.xlane.f32.xlu0 %v468
    %v470 = vpop.xlane.xlu0 %469
    %v471 = vrcp.pop %v470
    %v472 = vmul.f32 %v467, %v471
    %474 = vrot.lane.b32.xlu0 %v203, 64
    %v475 = vpop.permute.xlu0 %474
    %v478 = vsel %vm297, %v472, 0
    %480 = vmatprep.subr.mxu0 0.0
    %481 = vmatpush1.msra.mxu0 0.0
    %482 = vmatprep.subr.mxu0 0.0
    %483 = vmatpush1.msra.mxu0 0.0
    %484 = vmatprep.subr.mxu0 0.0
    %485 = vmatpush1.msra.mxu0 0.0
    %486 = vmatprep.subr.mxu0 0.0
    %487 = vmatpush1.msra.mxu0 0.0
    %488 = vmatprep.subr.mxu0 0.0
    %489 = vmatpush1.msra.mxu0 0.0
    %490 = vmatprep.subr.mxu0 0.0
    %491 = vmatpush1.msra.mxu0 0.0
    %492 = vmatprep.subr.mxu0 0.0
    %493 = vmatpush1.msra.mxu0 0.0
    %494 = vmatprep.subr.mxu0 0.0
    %495 = vmatpush1.msra.mxu0 0.0
    %496 = vmatprep.subr.mxu0 0.0
    %497 = vmatpush1.msra.mxu0 0.0
    %498 = vmatprep.subr.mxu0 0.0
    %499 = vmatpush1.msra.mxu0 0.0
    %500 = vmatprep.subr.mxu0 0.0
    %501 = vmatpush1.msra.mxu0 0.0
    %502 = vmatprep.subr.mxu0 0.0
    %503 = vmatpush1.msra.mxu0 0.0
    %504 = vmatprep.subr.mxu0 0.0
    %505 = vmatpush1.msra.mxu0 0.0
    %506 = vmatprep.subr.mxu0 0.0
    %507 = vmatpush1.msra.mxu0 0.0
    %508 = vmatprep.subr.mxu0 0.0
    %509 = vmatpush1.msra.mxu0 0.0
    %510 = vmatprep.subr.mxu0 0.0
    %511 = vmatpush1.msra.mxu0 %v475
    %512 = vmatprep.subr.mxu0 0.0
    %513 = vmatpush2.msra.mxu0 0.0
    %514 = vmatprep.subr.mxu0 0.0
    %515 = vmatpush2.msra.mxu0 0.0
    %516 = vmatprep.subr.mxu0 0.0
    %517 = vmatpush2.msra.mxu0 0.0
    %518 = vmatprep.subr.mxu0 0.0
    %519 = vmatpush2.msra.mxu0 0.0
    %520 = vmatprep.subr.mxu0 0.0
    %521 = vmatpush2.msra.mxu0 0.0
    %522 = vmatprep.subr.mxu0 0.0
    %523 = vmatpush2.msra.mxu0 0.0
    %524 = vmatprep.subr.mxu0 0.0
    %525 = vmatpush2.msra.mxu0 0.0
    %526 = vmatprep.subr.mxu0 0.0
    %527 = vmatpush2.msra.mxu0 0.0
    %528 = vmatprep.subr.mxu0 0.0
    %529 = vmatpush2.msra.mxu0 0.0
    %530 = vmatprep.subr.mxu0 0.0
    %531 = vmatpush2.msra.mxu0 0.0
    %532 = vmatprep.subr.mxu0 0.0
    %533 = vmatpush2.msra.mxu0 0.0
    %534 = vmatprep.subr.mxu0 0.0
    %535 = vmatpush2.msra.mxu0 0.0
    %536 = vmatprep.subr.mxu0 0.0
    %537 = vmatpush2.msra.mxu0 0.0
    %538 = vmatprep.subr.mxu0 0.0
    %539 = vmatpush2.msra.mxu0 0.0
    %540 = vmatprep.subr.mxu0 0.0
    %541 = vmatpush2.msra.mxu0 0.0
    %542 = vmatprep.subr.mxu0 0.0
    %543 = vmatpush2.msra.mxu0 0.0
    %544 = vmatprep.mubr.f32.mxu0 0.0
    %545 = vmatmul.mubr.f32.gmra.mxu0 %v478
    %v546 = vpop.f32.mrf.mxu0
    %v547 = vadd.f32 0.0, %v546
    %v548 = vpop.f32.mrf.mxu0
    %549 = vdwg.mxu0
    %v551 = vsel %vm214, %v547, 0
    %553 = vmatprep.subr.mxu0 0.0
    %554 = vmatpush1.msra.mxu0 0.0
    %555 = vmatprep.subr.mxu0 0.0
    %556 = vmatpush1.msra.mxu0 0.0
    %557 = vmatprep.subr.mxu0 0.0
    %558 = vmatpush1.msra.mxu0 0.0
    %559 = vmatprep.subr.mxu0 0.0
    %560 = vmatpush1.msra.mxu0 0.0
    %561 = vmatprep.subr.mxu0 0.0
    %562 = vmatpush1.msra.mxu0 0.0
    %563 = vmatprep.subr.mxu0 0.0
    %564 = vmatpush1.msra.mxu0 0.0
    %565 = vmatprep.subr.mxu0 0.0
    %566 = vmatpush1.msra.mxu0 0.0
    %567 = vmatprep.subr.mxu0 0.0
    %568 = vmatpush1.msra.mxu0 0.0
    %569 = vmatprep.subr.mxu0 0.0
    %570 = vmatpush1.msra.mxu0 %v38
    %571 = vmatprep.subr.mxu0 0.0
    %572 = vmatpush1.msra.mxu0 %v37
    %573 = vmatprep.subr.mxu0 0.0
    %574 = vmatpush1.msra.mxu0 %v36
    %575 = vmatprep.subr.mxu0 0.0
    %576 = vmatpush1.msra.mxu0 %v35
    %577 = vmatprep.subr.mxu0 0.0
    %578 = vmatpush1.msra.mxu0 %v34
    %579 = vmatprep.subr.mxu0 0.0
    %580 = vmatpush1.msra.mxu0 %v33
    %581 = vmatprep.subr.mxu0 0.0
    %582 = vmatpush1.msra.mxu0 %v32
    %583 = vmatprep.subr.mxu0 0.0
    %584 = vmatpush1.msra.mxu0 %v31
    %585 = vmatprep.subr.mxu0 0.0
    %586 = vmatpush2.msra.mxu0 0.0
    %587 = vmatprep.subr.mxu0 0.0
    %588 = vmatpush2.msra.mxu0 0.0
    %589 = vmatprep.subr.mxu0 0.0
    %590 = vmatpush2.msra.mxu0 0.0
    %591 = vmatprep.subr.mxu0 0.0
    %592 = vmatpush2.msra.mxu0 0.0
    %593 = vmatprep.subr.mxu0 0.0
    %594 = vmatpush2.msra.mxu0 0.0
    %595 = vmatprep.subr.mxu0 0.0
    %596 = vmatpush2.msra.mxu0 0.0
    %597 = vmatprep.subr.mxu0 0.0
    %598 = vmatpush2.msra.mxu0 0.0
    %599 = vmatprep.subr.mxu0 0.0
    %600 = vmatpush2.msra.mxu0 0.0
    %601 = vmatprep.subr.mxu0 0.0
    %602 = vmatpush2.msra.mxu0 0.0
    %603 = vmatprep.subr.mxu0 0.0
    %604 = vmatpush2.msra.mxu0 0.0
    %605 = vmatprep.subr.mxu0 0.0
    %606 = vmatpush2.msra.mxu0 0.0
    %607 = vmatprep.subr.mxu0 0.0
    %608 = vmatpush2.msra.mxu0 0.0
    %609 = vmatprep.subr.mxu0 0.0
    %610 = vmatpush2.msra.mxu0 0.0
    %611 = vmatprep.subr.mxu0 0.0
    %612 = vmatpush2.msra.mxu0 0.0
    %613 = vmatprep.subr.mxu0 0.0
    %614 = vmatpush2.msra.mxu0 0.0
    %615 = vmatprep.subr.mxu0 0.0
    %616 = vmatpush2.msra.mxu0 0.0
    %617 = vmatprep.mubr.f32.mxu0 0.0
    %618 = vmatmul.mubr.f32.gmra.mxu0 %v551
    %v619 = vpop.f32.mrf.mxu0
    %v620 = vadd.f32 0.0, %v619
    %v621 = vpop.f32.mrf.mxu0
    %622 = vdwg.mxu0
    %v624 = vsel %vm214, %v379, 0
    %626 = vmatprep.subr.mxu0 0.0
    %627 = vmatpush1.msra.mxu0 0.0
    %628 = vmatprep.subr.mxu0 0.0
    %629 = vmatpush1.msra.mxu0 0.0
    %630 = vmatprep.subr.mxu0 0.0
    %631 = vmatpush1.msra.mxu0 0.0
    %632 = vmatprep.subr.mxu0 0.0
    %633 = vmatpush1.msra.mxu0 0.0
    %634 = vmatprep.subr.mxu0 0.0
    %635 = vmatpush1.msra.mxu0 0.0
    %636 = vmatprep.subr.mxu0 0.0
    %637 = vmatpush1.msra.mxu0 0.0
    %638 = vmatprep.subr.mxu0 0.0
    %639 = vmatpush1.msra.mxu0 0.0
    %640 = vmatprep.subr.mxu0 0.0
    %641 = vmatpush1.msra.mxu0 0.0
    %642 = vmatprep.subr.mxu0 0.0
    %643 = vmatpush1.msra.mxu0 %v30
    %644 = vmatprep.subr.mxu0 0.0
    %645 = vmatpush1.msra.mxu0 %v29
    %646 = vmatprep.subr.mxu0 0.0
    %647 = vmatpush1.msra.mxu0 %v28
    %648 = vmatprep.subr.mxu0 0.0
    %649 = vmatpush1.msra.mxu0 %v27
    %650 = vmatprep.subr.mxu0 0.0
    %651 = vmatpush1.msra.mxu0 %v26
    %652 = vmatprep.subr.mxu0 0.0
    %653 = vmatpush1.msra.mxu0 %v25
    %654 = vmatprep.subr.mxu0 0.0
    %655 = vmatpush1.msra.mxu0 %v24
    %656 = vmatprep.subr.mxu0 0.0
    %657 = vmatpush1.msra.mxu0 %v23
    %658 = vmatprep.subr.mxu0 0.0
    %659 = vmatpush2.msra.mxu0 0.0
    %660 = vmatprep.subr.mxu0 0.0
    %661 = vmatpush2.msra.mxu0 0.0
    %662 = vmatprep.subr.mxu0 0.0
    %663 = vmatpush2.msra.mxu0 0.0
    %664 = vmatprep.subr.mxu0 0.0
    %665 = vmatpush2.msra.mxu0 0.0
    %666 = vmatprep.subr.mxu0 0.0
    %667 = vmatpush2.msra.mxu0 0.0
    %668 = vmatprep.subr.mxu0 0.0
    %669 = vmatpush2.msra.mxu0 0.0
    %670 = vmatprep.subr.mxu0 0.0
    %671 = vmatpush2.msra.mxu0 0.0
    %672 = vmatprep.subr.mxu0 0.0
    %673 = vmatpush2.msra.mxu0 0.0
    %674 = vmatprep.subr.mxu0 0.0
    %675 = vmatpush2.msra.mxu0 0.0
    %676 = vmatprep.subr.mxu0 0.0
    %677 = vmatpush2.msra.mxu0 0.0
    %678 = vmatprep.subr.mxu0 0.0
    %679 = vmatpush2.msra.mxu0 0.0
    %680 = vmatprep.subr.mxu0 0.0
    %681 = vmatpush2.msra.mxu0 0.0
    %682 = vmatprep.subr.mxu0 0.0
    %683 = vmatpush2.msra.mxu0 0.0
    %684 = vmatprep.subr.mxu0 0.0
    %685 = vmatpush2.msra.mxu0 0.0
    %686 = vmatprep.subr.mxu0 0.0
    %687 = vmatpush2.msra.mxu0 0.0
    %688 = vmatprep.subr.mxu0 0.0
    %689 = vmatpush2.msra.mxu0 0.0
    %690 = vmatprep.mubr.f32.mxu0 0.0
    %691 = vmatmul.mubr.f32.gmra.mxu0 %v624
    %v692 = vpop.f32.mrf.mxu0
    %v693 = vadd.f32 %v620, %v692
    %v694 = vpop.f32.mrf.mxu0
    %695 = vdwg.mxu0
    %v697 = vlaneseq
    %v698 = vshrl.u32 %v697, 7
    %v699 = vsub.s32 0, %v698
    %v700 = vrot.slane %v39, %v699
    %v702 = vadd.f32 %v693, %v700
    %703 = vst.msk [vmem:[#allocation2] sm:$0xff] %vm52, %v702
    %v705 = vsel %vm214, %v132, 0
    %v708 = vsel %vm214, %v134, 0
    %710 = vmatprep.subr.mxu0 0.0
    %711 = vmatpush1.xpose.msra.mxu0 0.0
    %712 = vmatprep.subr.mxu0 0.0
    %713 = vmatpush1.xpose.msra.mxu0 0.0
    %714 = vmatprep.subr.mxu0 0.0
    %715 = vmatpush1.xpose.msra.mxu0 0.0
    %716 = vmatprep.subr.mxu0 0.0
    %717 = vmatpush1.xpose.msra.mxu0 0.0
    %718 = vmatprep.subr.mxu0 0.0
    %719 = vmatpush1.xpose.msra.mxu0 0.0
    %720 = vmatprep.subr.mxu0 0.0
    %721 = vmatpush1.xpose.msra.mxu0 0.0
    %722 = vmatprep.subr.mxu0 0.0
    %723 = vmatpush1.xpose.msra.mxu0 0.0
    %724 = vmatprep.subr.mxu0 0.0
    %725 = vmatpush1.xpose.msra.mxu0 0.0
    %726 = vmatprep.subr.mxu0 0.0
    %727 = vmatpush1.xpose.msra.mxu0 0.0
    %728 = vmatprep.subr.mxu0 0.0
    %729 = vmatpush1.xpose.msra.mxu0 0.0
    %730 = vmatprep.subr.mxu0 0.0
    %731 = vmatpush1.xpose.msra.mxu0 0.0
    %732 = vmatprep.subr.mxu0 0.0
    %733 = vmatpush1.xpose.msra.mxu0 0.0
    %734 = vmatprep.subr.mxu0 0.0
    %735 = vmatpush1.xpose.msra.mxu0 0.0
    %736 = vmatprep.subr.mxu0 0.0
    %737 = vmatpush1.xpose.msra.mxu0 0.0
    %738 = vmatprep.subr.mxu0 0.0
    %739 = vmatpush1.xpose.msra.mxu0 0.0
    %740 = vmatprep.subr.mxu0 0.0
    %741 = vmatpush1.xpose.msra.mxu0 %v708
    %742 = vmatprep.subr.mxu0 0.0
    %743 = vmatpush2.xpose.msra.mxu0 0.0
    %744 = vmatprep.subr.mxu0 0.0
    %745 = vmatpush2.xpose.msra.mxu0 0.0
    %746 = vmatprep.subr.mxu0 0.0
    %747 = vmatpush2.xpose.msra.mxu0 0.0
    %748 = vmatprep.subr.mxu0 0.0
    %749 = vmatpush2.xpose.msra.mxu0 0.0
    %750 = vmatprep.subr.mxu0 0.0
    %751 = vmatpush2.xpose.msra.mxu0 0.0
    %752 = vmatprep.subr.mxu0 0.0
    %753 = vmatpush2.xpose.msra.mxu0 0.0
    %754 = vmatprep.subr.mxu0 0.0
    %755 = vmatpush2.xpose.msra.mxu0 0.0
    %756 = vmatprep.subr.mxu0 0.0
    %757 = vmatpush2.xpose.msra.mxu0 0.0
    %758 = vmatprep.subr.mxu0 0.0
    %759 = vmatpush2.xpose.msra.mxu0 0.0
    %760 = vmatprep.subr.mxu0 0.0
    %761 = vmatpush2.xpose.msra.mxu0 0.0
    %762 = vmatprep.subr.mxu0 0.0
    %763 = vmatpush2.xpose.msra.mxu0 0.0
    %764 = vmatprep.subr.mxu0 0.0
    %765 = vmatpush2.xpose.msra.mxu0 0.0
    %766 = vmatprep.subr.mxu0 0.0
    %767 = vmatpush2.xpose.msra.mxu0 0.0
    %768 = vmatprep.subr.mxu0 0.0
    %769 = vmatpush2.xpose.msra.mxu0 0.0
    %770 = vmatprep.subr.mxu0 0.0
    %771 = vmatpush2.xpose.msra.mxu0 0.0
    %772 = vmatprep.subr.mxu0 0.0
    %773 = vmatpush2.xpose.msra.mxu0 0.0
    %774 = vmatprep.mubr.f32.mxu0 0.0
    %775 = vmatmul.mubr.f32.gmra.mxu0 %v705
    %v776 = vpop.f32.mrf.mxu0
    %v777 = vadd.f32 0.0, %v776
    %v778 = vpop.f32.mrf.mxu0
    %779 = vdwg.mxu0
    %v780 = vmul.f32 %v777, 0.17677669
    %v781 = vlaneseq
    %v782 = vshrl.u32 %v781, 7
    %v783 = vsub.s32 1, %v782
    %v784 = vrot.slane %v213, %v783
    %v785 = vadd.f32 %v780, %v784
    %v786 = vsel %vm297, %v785, -inf
    %787 = vmax.xlane.f32.xlu0 %v786
    %v788 = vpop.xlane.xlu0 %787
    %v789 = vsub.f32 %v785, %v788
    %v790 = vmul.f32 %v789, 1.442695
    %v791 = vpow.pop %v790
    %v792 = vsel %vm297, %v791, 0.0
    %793 = vadd.xlane.f32.xlu0 %v792
    %v794 = vpop.xlane.xlu0 %793
    %v795 = vrcp.pop %v794
    %v796 = vmul.f32 %v791, %v795
    %v798 = vsel %vm297, %v796, 0
    %800 = vmatprep.subr.mxu0 0.0
    %801 = vmatpush1.msra.mxu0 0.0
    %802 = vmatprep.subr.mxu0 0.0
    %803 = vmatpush1.msra.mxu0 0.0
    %804 = vmatprep.subr.mxu0 0.0
    %805 = vmatpush1.msra.mxu0 0.0
    %806 = vmatprep.subr.mxu0 0.0
    %807 = vmatpush1.msra.mxu0 0.0
    %808 = vmatprep.subr.mxu0 0.0
    %809 = vmatpush1.msra.mxu0 0.0
    %810 = vmatprep.subr.mxu0 0.0
    %811 = vmatpush1.msra.mxu0 0.0
    %812 = vmatprep.subr.mxu0 0.0
    %813 = vmatpush1.msra.mxu0 0.0
    %814 = vmatprep.subr.mxu0 0.0
    %815 = vmatpush1.msra.mxu0 0.0
    %816 = vmatprep.subr.mxu0 0.0
    %817 = vmatpush1.msra.mxu0 0.0
    %818 = vmatprep.subr.mxu0 0.0
    %819 = vmatpush1.msra.mxu0 0.0
    %820 = vmatprep.subr.mxu0 0.0
    %821 = vmatpush1.msra.mxu0 0.0
    %822 = vmatprep.subr.mxu0 0.0
    %823 = vmatpush1.msra.mxu0 0.0
    %824 = vmatprep.subr.mxu0 0.0
    %825 = vmatpush1.msra.mxu0 0.0
    %826 = vmatprep.subr.mxu0 0.0
    %827 = vmatpush1.msra.mxu0 0.0
    %828 = vmatprep.subr.mxu0 0.0
    %829 = vmatpush1.msra.mxu0 0.0
    %830 = vmatprep.subr.mxu0 0.0
    %831 = vmatpush1.msra.mxu0 %v208
    %832 = vmatprep.subr.mxu0 0.0
    %833 = vmatpush2.msra.mxu0 0.0
    %834 = vmatprep.subr.mxu0 0.0
    %835 = vmatpush2.msra.mxu0 0.0
    %836 = vmatprep.subr.mxu0 0.0
    %837 = vmatpush2.msra.mxu0 0.0
    %838 = vmatprep.subr.mxu0 0.0
    %839 = vmatpush2.msra.mxu0 0.0
    %840 = vmatprep.subr.mxu0 0.0
    %841 = vmatpush2.msra.mxu0 0.0
    %842 = vmatprep.subr.mxu0 0.0
    %843 = vmatpush2.msra.mxu0 0.0
    %844 = vmatprep.subr.mxu0 0.0
    %845 = vmatpush2.msra.mxu0 0.0
    %846 = vmatprep.subr.mxu0 0.0
    %847 = vmatpush2.msra.mxu0 0.0
    %848 = vmatprep.subr.mxu0 0.0
    %849 = vmatpush2.msra.mxu0 0.0
    %850 = vmatprep.subr.mxu0 0.0
    %851 = vmatpush2.msra.mxu0 0.0
    %852 = vmatprep.subr.mxu0 0.0
    %853 = vmatpush2.msra.mxu0 0.0
    %854 = vmatprep.subr.mxu0 0.0
    %855 = vmatpush2.msra.mxu0 0.0
    %856 = vmatprep.subr.mxu0 0.0
    %857 = vmatpush2.msra.mxu0 0.0
    %858 = vmatprep.subr.mxu0 0.0
    %859 = vmatpush2.msra.mxu0 0.0
    %860 = vmatprep.subr.mxu0 0.0
    %861 = vmatpush2.msra.mxu0 0.0
    %862 = vmatprep.subr.mxu0 0.0
    %863 = vmatpush2.msra.mxu0 0.0
    %864 = vmatprep.mubr.f32.mxu0 0.0
    %865 = vmatmul.mubr.f32.gmra.mxu0 %v798
    %v866 = vpop.f32.mrf.mxu0
    %v867 = vadd.f32 0.0, %v866
    %v868 = vpop.f32.mrf.mxu0
    %869 = vdwg.mxu0
    %870 = vrot.lane.b32.xlu0 %v132, 64
    %v871 = vpop.permute.xlu0 %870
    %872 = vrot.lane.b32.xlu0 %v134, 64
    %v873 = vpop.permute.xlu0 %872
    %v874 = vsel %vm214, %v871, 0
    %v876 = vsel %vm214, %v873, 0
    %878 = vmatprep.subr.mxu0 0.0
    %879 = vmatpush1.xpose.msra.mxu0 0.0
    %880 = vmatprep.subr.mxu0 0.0
    %881 = vmatpush1.xpose.msra.mxu0 0.0
    %882 = vmatprep.subr.mxu0 0.0
    %883 = vmatpush1.xpose.msra.mxu0 0.0
    %884 = vmatprep.subr.mxu0 0.0
    %885 = vmatpush1.xpose.msra.mxu0 0.0
    %886 = vmatprep.subr.mxu0 0.0
    %887 = vmatpush1.xpose.msra.mxu0 0.0
    %888 = vmatprep.subr.mxu0 0.0
    %889 = vmatpush1.xpose.msra.mxu0 0.0
    %890 = vmatprep.subr.mxu0 0.0
    %891 = vmatpush1.xpose.msra.mxu0 0.0
    %892 = vmatprep.subr.mxu0 0.0
    %893 = vmatpush1.xpose.msra.mxu0 0.0
    %894 = vmatprep.subr.mxu0 0.0
    %895 = vmatpush1.xpose.msra.mxu0 0.0
    %896 = vmatprep.subr.mxu0 0.0
    %897 = vmatpush1.xpose.msra.mxu0 0.0
    %898 = vmatprep.subr.mxu0 0.0
    %899 = vmatpush1.xpose.msra.mxu0 0.0
    %900 = vmatprep.subr.mxu0 0.0
    %901 = vmatpush1.xpose.msra.mxu0 0.0
    %902 = vmatprep.subr.mxu0 0.0
    %903 = vmatpush1.xpose.msra.mxu0 0.0
    %904 = vmatprep.subr.mxu0 0.0
    %905 = vmatpush1.xpose.msra.mxu0 0.0
    %906 = vmatprep.subr.mxu0 0.0
    %907 = vmatpush1.xpose.msra.mxu0 0.0
    %908 = vmatprep.subr.mxu0 0.0
    %909 = vmatpush1.xpose.msra.mxu0 %v876
    %910 = vmatprep.subr.mxu0 0.0
    %911 = vmatpush2.xpose.msra.mxu0 0.0
    %912 = vmatprep.subr.mxu0 0.0
    %913 = vmatpush2.xpose.msra.mxu0 0.0
    %914 = vmatprep.subr.mxu0 0.0
    %915 = vmatpush2.xpose.msra.mxu0 0.0
    %916 = vmatprep.subr.mxu0 0.0
    %917 = vmatpush2.xpose.msra.mxu0 0.0
    %918 = vmatprep.subr.mxu0 0.0
    %919 = vmatpush2.xpose.msra.mxu0 0.0
    %920 = vmatprep.subr.mxu0 0.0
    %921 = vmatpush2.xpose.msra.mxu0 0.0
    %922 = vmatprep.subr.mxu0 0.0
    %923 = vmatpush2.xpose.msra.mxu0 0.0
    %924 = vmatprep.subr.mxu0 0.0
    %925 = vmatpush2.xpose.msra.mxu0 0.0
    %926 = vmatprep.subr.mxu0 0.0
    %927 = vmatpush2.xpose.msra.mxu0 0.0
    %928 = vmatprep.subr.mxu0 0.0
    %929 = vmatpush2.xpose.msra.mxu0 0.0
    %930 = vmatprep.subr.mxu0 0.0
    %931 = vmatpush2.xpose.msra.mxu0 0.0
    %932 = vmatprep.subr.mxu0 0.0
    %933 = vmatpush2.xpose.msra.mxu0 0.0
    %934 = vmatprep.subr.mxu0 0.0
    %935 = vmatpush2.xpose.msra.mxu0 0.0
    %936 = vmatprep.subr.mxu0 0.0
    %937 = vmatpush2.xpose.msra.mxu0 0.0
    %938 = vmatprep.subr.mxu0 0.0
    %939 = vmatpush2.xpose.msra.mxu0 0.0
    %940 = vmatprep.subr.mxu0 0.0
    %941 = vmatpush2.xpose.msra.mxu0 0.0
    %942 = vmatprep.mubr.f32.mxu0 0.0
    %943 = vmatmul.mubr.f32.gmra.mxu0 %v874
    %v944 = vpop.f32.mrf.mxu0
    %v945 = vadd.f32 0.0, %v944
    %v946 = vpop.f32.mrf.mxu0
    %947 = vdwg.mxu0
    %v948 = vmul.f32 %v945, 0.17677669
    %v949 = vadd.f32 %v948, %v784
    %v950 = vsel %vm297, %v949, -inf
    %951 = vmax.xlane.f32.xlu0 %v950
    %v952 = vpop.xlane.xlu0 %951
    %v953 = vsub.f32 %v949, %v952
    %v954 = vmul.f32 %v953, 1.442695
    %v955 = vpow.pop %v954
    %v956 = vsel %vm297, %v955, 0.0
    %957 = vadd.xlane.f32.xlu0 %v956
    %v958 = vpop.xlane.xlu0 %957
    %v959 = vrcp.pop %v958
    %v960 = vmul.f32 %v955, %v959
    %962 = vrot.lane.b32.xlu0 %v208, 64
    %v963 = vpop.permute.xlu0 %962
    %v966 = vsel %vm297, %v960, 0
    %968 = vmatprep.subr.mxu0 0.0
    %969 = vmatpush1.msra.mxu0 0.0
    %970 = vmatprep.subr.mxu0 0.0
    %971 = vmatpush1.msra.mxu0 0.0
    %972 = vmatprep.subr.mxu0 0.0
    %973 = vmatpush1.msra.mxu0 0.0
    %974 = vmatprep.subr.mxu0 0.0
    %975 = vmatpush1.msra.mxu0 0.0
    %976 = vmatprep.subr.mxu0 0.0
    %977 = vmatpush1.msra.mxu0 0.0
    %978 = vmatprep.subr.mxu0 0.0
    %979 = vmatpush1.msra.mxu0 0.0
    %980 = vmatprep.subr.mxu0 0.0
    %981 = vmatpush1.msra.mxu0 0.0
    %982 = vmatprep.subr.mxu0 0.0
    %983 = vmatpush1.msra.mxu0 0.0
    %984 = vmatprep.subr.mxu0 0.0
    %985 = vmatpush1.msra.mxu0 0.0
    %986 = vmatprep.subr.mxu0 0.0
    %987 = vmatpush1.msra.mxu0 0.0
    %988 = vmatprep.subr.mxu0 0.0
    %989 = vmatpush1.msra.mxu0 0.0
    %990 = vmatprep.subr.mxu0 0.0
    %991 = vmatpush1.msra.mxu0 0.0
    %992 = vmatprep.subr.mxu0 0.0
    %993 = vmatpush1.msra.mxu0 0.0
    %994 = vmatprep.subr.mxu0 0.0
    %995 = vmatpush1.msra.mxu0 0.0
    %996 = vmatprep.subr.mxu0 0.0
    %997 = vmatpush1.msra.mxu0 0.0
    %998 = vmatprep.subr.mxu0 0.0
    %999 = vmatpush1.msra.mxu0 %v963
    %1000 = vmatprep.subr.mxu0 0.0
    %1001 = vmatpush2.msra.mxu0 0.0
    %1002 = vmatprep.subr.mxu0 0.0
    %1003 = vmatpush2.msra.mxu0 0.0
    %1004 = vmatprep.subr.mxu0 0.0
    %1005 = vmatpush2.msra.mxu0 0.0
    %1006 = vmatprep.subr.mxu0 0.0
    %1007 = vmatpush2.msra.mxu0 0.0
    %1008 = vmatprep.subr.mxu0 0.0
    %1009 = vmatpush2.msra.mxu0 0.0
    %1010 = vmatprep.subr.mxu0 0.0
    %1011 = vmatpush2.msra.mxu0 0.0
    %1012 = vmatprep.subr.mxu0 0.0
    %1013 = vmatpush2.msra.mxu0 0.0
    %1014 = vmatprep.subr.mxu0 0.0
    %1015 = vmatpush2.msra.mxu0 0.0
    %1016 = vmatprep.subr.mxu0 0.0
    %1017 = vmatpush2.msra.mxu0 0.0
    %1018 = vmatprep.subr.mxu0 0.0
    %1019 = vmatpush2.msra.mxu0 0.0
    %1020 = vmatprep.subr.mxu0 0.0
    %1021 = vmatpush2.msra.mxu0 0.0
    %1022 = vmatprep.subr.mxu0 0.0
    %1023 = vmatpush2.msra.mxu0 0.0
    %1024 = vmatprep.subr.mxu0 0.0
    %1025 = vmatpush2.msra.mxu0 0.0
    %1026 = vmatprep.subr.mxu0 0.0
    %1027 = vmatpush2.msra.mxu0 0.0
    %1028 = vmatprep.subr.mxu0 0.0
    %1029 = vmatpush2.msra.mxu0 0.0
    %1030 = vmatprep.subr.mxu0 0.0
    %1031 = vmatpush2.msra.mxu0 0.0
    %1032 = vmatprep.mubr.f32.mxu0 0.0
    %1033 = vmatmul.mubr.f32.gmra.mxu0 %v966
    %v1034 = vpop.f32.mrf.mxu0
    %v1035 = vadd.f32 0.0, %v1034
    %v1036 = vpop.f32.mrf.mxu0
    %1037 = vdwg.mxu0
    %v1039 = vsel %vm214, %v1035, 0
    %1041 = vmatprep.subr.mxu0 0.0
    %1042 = vmatpush1.msra.mxu0 0.0
    %1043 = vmatprep.subr.mxu0 0.0
    %1044 = vmatpush1.msra.mxu0 0.0
    %1045 = vmatprep.subr.mxu0 0.0
    %1046 = vmatpush1.msra.mxu0 0.0
    %1047 = vmatprep.subr.mxu0 0.0
    %1048 = vmatpush1.msra.mxu0 0.0
    %1049 = vmatprep.subr.mxu0 0.0
    %1050 = vmatpush1.msra.mxu0 0.0
    %1051 = vmatprep.subr.mxu0 0.0
    %1052 = vmatpush1.msra.mxu0 0.0
    %1053 = vmatprep.subr.mxu0 0.0
    %1054 = vmatpush1.msra.mxu0 0.0
    %1055 = vmatprep.subr.mxu0 0.0
    %1056 = vmatpush1.msra.mxu0 0.0
    %1057 = vmatprep.subr.mxu0 0.0
    %1058 = vmatpush1.msra.mxu0 %v38
    %1059 = vmatprep.subr.mxu0 0.0
    %1060 = vmatpush1.msra.mxu0 %v37
    %1061 = vmatprep.subr.mxu0 0.0
    %1062 = vmatpush1.msra.mxu0 %v36
    %1063 = vmatprep.subr.mxu0 0.0
    %1064 = vmatpush1.msra.mxu0 %v35
    %1065 = vmatprep.subr.mxu0 0.0
    %1066 = vmatpush1.msra.mxu0 %v34
    %1067 = vmatprep.subr.mxu0 0.0
    %1068 = vmatpush1.msra.mxu0 %v33
    %1069 = vmatprep.subr.mxu0 0.0
    %1070 = vmatpush1.msra.mxu0 %v32
    %1071 = vmatprep.subr.mxu0 0.0
    %1072 = vmatpush1.msra.mxu0 %v31
    %1073 = vmatprep.subr.mxu0 0.0
    %1074 = vmatpush2.msra.mxu0 0.0
    %1075 = vmatprep.subr.mxu0 0.0
    %1076 = vmatpush2.msra.mxu0 0.0
    %1077 = vmatprep.subr.mxu0 0.0
    %1078 = vmatpush2.msra.mxu0 0.0
    %1079 = vmatprep.subr.mxu0 0.0
    %1080 = vmatpush2.msra.mxu0 0.0
    %1081 = vmatprep.subr.mxu0 0.0
    %1082 = vmatpush2.msra.mxu0 0.0
    %1083 = vmatprep.subr.mxu0 0.0
    %1084 = vmatpush2.msra.mxu0 0.0
    %1085 = vmatprep.subr.mxu0 0.0
    %1086 = vmatpush2.msra.mxu0 0.0
    %1087 = vmatprep.subr.mxu0 0.0
    %1088 = vmatpush2.msra.mxu0 0.0
    %1089 = vmatprep.subr.mxu0 0.0
    %1090 = vmatpush2.msra.mxu0 0.0
    %1091 = vmatprep.subr.mxu0 0.0
    %1092 = vmatpush2.msra.mxu0 0.0
    %1093 = vmatprep.subr.mxu0 0.0
    %1094 = vmatpush2.msra.mxu0 0.0
    %1095 = vmatprep.subr.mxu0 0.0
    %1096 = vmatpush2.msra.mxu0 0.0
    %1097 = vmatprep.subr.mxu0 0.0
    %1098 = vmatpush2.msra.mxu0 0.0
    %1099 = vmatprep.subr.mxu0 0.0
    %1100 = vmatpush2.msra.mxu0 0.0
    %1101 = vmatprep.subr.mxu0 0.0
    %1102 = vmatpush2.msra.mxu0 0.0
    %1103 = vmatprep.subr.mxu0 0.0
    %1104 = vmatpush2.msra.mxu0 0.0
    %1105 = vmatprep.mubr.f32.mxu0 0.0
    %1106 = vmatmul.mubr.f32.gmra.mxu0 %v1039
    %v1107 = vpop.f32.mrf.mxu0
    %v1108 = vadd.f32 0.0, %v1107
    %v1109 = vpop.f32.mrf.mxu0
    %1110 = vdwg.mxu0
    %v1112 = vsel %vm214, %v867, 0
    %1114 = vmatprep.subr.mxu0 0.0
    %1115 = vmatpush1.msra.mxu0 0.0
    %1116 = vmatprep.subr.mxu0 0.0
    %1117 = vmatpush1.msra.mxu0 0.0
    %1118 = vmatprep.subr.mxu0 0.0
    %1119 = vmatpush1.msra.mxu0 0.0
    %1120 = vmatprep.subr.mxu0 0.0
    %1121 = vmatpush1.msra.mxu0 0.0
    %1122 = vmatprep.subr.mxu0 0.0
    %1123 = vmatpush1.msra.mxu0 0.0
    %1124 = vmatprep.subr.mxu0 0.0
    %1125 = vmatpush1.msra.mxu0 0.0
    %1126 = vmatprep.subr.mxu0 0.0
    %1127 = vmatpush1.msra.mxu0 0.0
    %1128 = vmatprep.subr.mxu0 0.0
    %1129 = vmatpush1.msra.mxu0 0.0
    %1130 = vmatprep.subr.mxu0 0.0
    %1131 = vmatpush1.msra.mxu0 %v30
    %1132 = vmatprep.subr.mxu0 0.0
    %1133 = vmatpush1.msra.mxu0 %v29
    %1134 = vmatprep.subr.mxu0 0.0
    %1135 = vmatpush1.msra.mxu0 %v28
    %1136 = vmatprep.subr.mxu0 0.0
    %1137 = vmatpush1.msra.mxu0 %v27
    %1138 = vmatprep.subr.mxu0 0.0
    %1139 = vmatpush1.msra.mxu0 %v26
    %1140 = vmatprep.subr.mxu0 0.0
    %1141 = vmatpush1.msra.mxu0 %v25
    %1142 = vmatprep.subr.mxu0 0.0
    %1143 = vmatpush1.msra.mxu0 %v24
    %1144 = vmatprep.subr.mxu0 0.0
    %1145 = vmatpush1.msra.mxu0 %v23
    %1146 = vmatprep.subr.mxu0 0.0
    %1147 = vmatpush2.msra.mxu0 0.0
    %1148 = vmatprep.subr.mxu0 0.0
    %1149 = vmatpush2.msra.mxu0 0.0
    %1150 = vmatprep.subr.mxu0 0.0
    %1151 = vmatpush2.msra.mxu0 0.0
    %1152 = vmatprep.subr.mxu0 0.0
    %1153 = vmatpush2.msra.mxu0 0.0
    %1154 = vmatprep.subr.mxu0 0.0
    %1155 = vmatpush2.msra.mxu0 0.0
    %1156 = vmatprep.subr.mxu0 0.0
    %1157 = vmatpush2.msra.mxu0 0.0
    %1158 = vmatprep.subr.mxu0 0.0
    %1159 = vmatpush2.msra.mxu0 0.0
    %1160 = vmatprep.subr.mxu0 0.0
    %1161 = vmatpush2.msra.mxu0 0.0
    %1162 = vmatprep.subr.mxu0 0.0
    %1163 = vmatpush2.msra.mxu0 0.0
    %1164 = vmatprep.subr.mxu0 0.0
    %1165 = vmatpush2.msra.mxu0 0.0
    %1166 = vmatprep.subr.mxu0 0.0
    %1167 = vmatpush2.msra.mxu0 0.0
    %1168 = vmatprep.subr.mxu0 0.0
    %1169 = vmatpush2.msra.mxu0 0.0
    %1170 = vmatprep.subr.mxu0 0.0
    %1171 = vmatpush2.msra.mxu0 0.0
    %1172 = vmatprep.subr.mxu0 0.0
    %1173 = vmatpush2.msra.mxu0 0.0
    %1174 = vmatprep.subr.mxu0 0.0
    %1175 = vmatpush2.msra.mxu0 0.0
    %1176 = vmatprep.subr.mxu0 0.0
    %1177 = vmatpush2.msra.mxu0 0.0
    %1178 = vmatprep.mubr.f32.mxu0 0.0
    %1179 = vmatmul.mubr.f32.gmra.mxu0 %v1112
    %v1180 = vpop.f32.mrf.mxu0
    %v1181 = vadd.f32 %v1108, %v1180
    %v1182 = vpop.f32.mrf.mxu0
    %1183 = vdwg.mxu0
    %v1184 = vadd.f32 %v1181, %v700
    %1185 = vst.msk [vmem:[#allocation2 + $0x8] sm:$0xff] %vm52, %v1184
    // Predicated region
    $region22: #{attention_pallas.1} parent=1 // pred_check
      _
    $region23: #{attention_pallas.1} parent=1 // pred_check_branch
      %1187 = sbr.rel (0) target = $region25
    $region24: #{attention_pallas.1} parent=1 // pred_region
      %s1189 = ssub.s32 256, 256
      %1190 = vsyncadd [#allocation3], %s1189
      %s1191 = sshll.u32 [#allocation2], 4
      %s1192 = int_to_ptr.vmem [resolvable:$true] %s1191
      %1197 = dma.vmem_to_hbm [thread:$0]  %s1192, 256, %s5, [#allocation3], 128, 128, 8
    $region25: #{attention_pallas.1} parent=1 // pred_fallthru
      _
    // Predicated region
    $region26: #{attention_pallas.1} parent=1 // pred_check
      _
    $region27: #{attention_pallas.1} parent=1 // pred_check_branch
      %1199 = sbr.rel (0) target = $region29
    $region28: #{attention_pallas.1} parent=1 // pred_region
      %1200 = dma.done [#allocation3], 256
    $region29: #{attention_pallas.1} parent=1 // pred_fallthru
      _
    %1201 = vsyncpa [#allocation3], 1

</llo_original>
